<compile_context>
chip_gen: v7x
topology: tpu7x:2x2x1
jax: 0.10.0
libtpu: 0.0.40
codegen_flags: <defaults>
</compile_context>

<pallas_src>
import functools

import jax
import jax.numpy as jnp
from jax.experimental import pallas as pl
from jax.experimental.pallas import tpu as pltpu


def _round_up(x: int, m: int) -> int:
    return ((x + m - 1) // m) * m


def _info_nce_kernel(q_ref, k_ref, out_ref, m_ref, l_ref, tgt_ref, *,
                     inv_temp: float, tm: int, tk: int,
                     n_valid: int, mask_cols: bool):
    i = pl.program_id(0)
    j = pl.program_id(1)
    inv_t = jnp.float32(inv_temp)

    @pl.when(j == 0)
    def _init():
        m_ref[...] = jnp.full_like(m_ref, -jnp.inf)
        l_ref[...] = jnp.zeros_like(l_ref)
        tgt_ref[...] = jnp.zeros_like(tgt_ref)

    # (tm, tk) logits tile on the MXU; contract the feature dim of BOTH
    # operands (== q @ k.T without materializing a transpose).
    s = jax.lax.dot_general(
        q_ref[...], k_ref[...],
        dimension_numbers=(((1,), (1,)), ((), ())),
        preferred_element_type=jnp.float32,
    ) * inv_t

    # Mask padded class columns to -inf (only emitted when N was padded;
    # padding is < tk so only the last class tile is ever partially masked).
    if mask_cols:
        col = j * tk + jax.lax.broadcasted_iota(jnp.int32, s.shape, 1)
        s = jnp.where(col < n_valid, s, -jnp.inf)

    # Target (diagonal) logit: accumulate from the <=2 class tiles whose
    # global column range intersects this row tile (no extra k stream).
    row_start = i * tm
    col_start = j * tk
    intersects = jnp.logical_and(col_start < row_start + tm,
                                 col_start + tk > row_start)

    @pl.when(intersects)
    def _target():
        row = row_start + jax.lax.broadcasted_iota(jnp.int32, s.shape, 0)
        col = col_start + jax.lax.broadcasted_iota(jnp.int32, s.shape, 1)
        tgt_ref[...] += jnp.sum(jnp.where(row == col, s, 0.0),
                                axis=1, keepdims=True)

    # Online (flash-style) log-sum-exp update over the class tiles.
    m_prev = m_ref[...]
    m_new = jnp.maximum(m_prev, jnp.max(s, axis=1, keepdims=True))
    alpha = jnp.exp(m_prev - m_new)
    l_ref[...] = alpha * l_ref[...] + jnp.sum(jnp.exp(s - m_new),
                                              axis=1, keepdims=True)
    m_ref[...] = m_new

    @pl.when(j == pl.num_programs(1) - 1)
    def _finalize():
        out_ref[...] = m_ref[...] + jnp.log(l_ref[...]) - tgt_ref[...]


def _vmem_limit_bytes() -> int:
    """Per-generation scoped-VMEM budget (conservative fallback = v7x 64 MiB)."""
    try:
        cap = int(pltpu.get_tpu_info().vmem_capacity_bytes)
    except Exception:
        cap = 64 << 20
    return min(int(cap * 0.75), 112 << 20)


def _axis_tiles(n: int, prefs) -> list:
    """Candidate tile sizes (largest first); a single covering tile if n is small."""
    tiles = []
    for p in prefs:
        t = _round_up(min(n, p), 8)
        if t not in tiles:
            tiles.append(t)
    return tiles


def _pick_tiles(n: int, c: int, itemsize: int, budget: int, big_vmem: bool):
    # tm is the arithmetic-intensity knob (k is re-streamed N/tm times),
    # so prefer the largest tm that fits; tk just amortizes per-step overhead.
    tm_prefs = (768, 512, 384, 256, 128) if big_vmem else (512, 384, 256, 128)
    tk_prefs = (512, 256, 128)

    def cost(tm, tk):
        return ((2 * tm + 2 * tk) * c * itemsize   # double-buffered q / k
                + 2 * tm * tk * 4                  # f32 score tile + temps
                + 8 * tm * 4)                      # out + m/l/tgt scratch

    tm_cands = _axis_tiles(n, tm_prefs)
    tk_cands = _axis_tiles(n, tk_prefs)
    for tm in tm_cands:
        for tk in tk_cands:
            if cost(tm, tk) <= budget:
                return tm, tk
    return tm_cands[-1], tk_cands[-1]


def info_nce_loss(sample_embeddings, augmented_sample_embeddings,
                  temperature: float = 0.07, *, _tiles=None):
    q, k = sample_embeddings, augmented_sample_embeddings
    assert q.ndim == 2 and q.shape == k.shape
    n, c = q.shape
    itemsize = jnp.dtype(q.dtype).itemsize

    vmem_limit = _vmem_limit_bytes()
    if _tiles is None:
        tm, tk = _pick_tiles(n, c, itemsize, int(vmem_limit * 0.8),
                             big_vmem=vmem_limit >= (72 << 20))
    else:
        tm, tk = _tiles  # test hook to force the multi-tile / masked paths

    # cdiv-style padding for awkward N; padded columns are masked to -inf in
    # the kernel, padded rows are sliced off before the mean.
    n_rows = _round_up(n, tm)
    n_cols = _round_up(n, tk)
    if n_rows != n:
        q = jnp.pad(q, ((0, n_rows - n), (0, 0)))
    if n_cols != n:
        k = jnp.pad(k, ((0, n_cols - n), (0, 0)))
    grid = (n_rows // tm, n_cols // tk)

    kernel = functools.partial(
        _info_nce_kernel,
        inv_temp=1.0 / float(temperature),
        tm=tm, tk=tk, n_valid=n, mask_cols=(n_cols != n))

    per_row = pl.pallas_call(
        kernel,
        out_shape=jax.ShapeDtypeStruct((n_rows, 1), jnp.float32),
        grid_spec=pltpu.PrefetchScalarGridSpec(
            num_scalar_prefetch=0,
            grid=grid,
            in_specs=[
                pl.BlockSpec((tm, c), lambda i, j: (i, 0)),  # q row tile
                pl.BlockSpec((tk, c), lambda i, j: (j, 0)),  # k class tile (streamed)
            ],
            out_specs=pl.BlockSpec((tm, 1), lambda i, j: (i, 0)),
            scratch_shapes=[
                pltpu.VMEM((tm, 1), jnp.float32),  # running max
                pltpu.VMEM((tm, 1), jnp.float32),  # running sum-exp
                pltpu.VMEM((tm, 1), jnp.float32),  # target (diagonal) logit
            ],
        ),
        compiler_params=pltpu.CompilerParams(
            dimension_semantics=("parallel", "arbitrary"),
            vmem_limit_bytes=vmem_limit,
        ),
        cost_estimate=pl.CostEstimate(
            flops=2 * n_rows * n_cols * c,
            transcendentals=n_rows * n_cols,
            bytes_accessed=(n_rows * c + grid[0] * n_cols * c) * itemsize
                           + n_rows * 4,
        ),
    )(q, k)

    # CrossEntropyLoss default reduction = mean over the (valid) batch.
    return jnp.mean(per_row[:n, 0])


def _reference_loss(q, k, temperature: float = 0.07):
    # Pure-JAX mirror of the PyTorch forward.
    logits = (q @ k.T) / temperature
    n = logits.shape[0]
    lse = jax.scipy.special.logsumexp(logits, axis=1)
    tgt = logits[jnp.arange(n), jnp.arange(n)]
    return jnp.mean(lse - tgt)


if __name__ == "__main__":
    key = jax.random.PRNGKey(0)
    k1, k2, k3, k4 = jax.random.split(key, 4)

    # Test 1: small shapes (batch=8, embedding dim=32) -- single-tile path.
    N, C = 8, 32
    q = jax.random.normal(k1, (N, C), dtype=jnp.float32)
    kk = jax.random.normal(k2, (N, C), dtype=jnp.float32)
    loss = info_nce_loss(q, kk, temperature=0.07)
    jax.block_until_ready(loss)
    ref = _reference_loss(q, kk, temperature=0.07)
    assert jnp.allclose(loss, ref, atol=1e-4, rtol=1e-4), (loss, ref)

    # Test 2: non-divisible N with small forced tiles -- exercises the
    # multi-tile online-LSE accumulation, diagonal gating across class tiles,
    # and the padded-column mask.
    N2, C2 = 40, 64
    q2 = jax.random.normal(k3, (N2, C2), dtype=jnp.float32)
    kk2 = jax.random.normal(k4, (N2, C2), dtype=jnp.float32)
    loss2 = info_nce_loss(q2, kk2, temperature=0.07, _tiles=(16, 16))
    jax.block_until_ready(loss2)
    ref2 = _reference_loss(q2, kk2, temperature=0.07)
    assert jnp.allclose(loss2, ref2, atol=1e-4, rtol=1e-4), (loss2, ref2)

    print("KERNEL_OK")
</pallas_src>

<mosaic_0001>
module attributes {stable_mosaic.version = 11 : i64} {
  func.func @_info_nce_kernel(%arg0: i32, %arg1: i32, %arg2: memref<8x32xf32, #tpu.memory_space<vmem>>, %arg3: memref<8x32xf32, #tpu.memory_space<vmem>>, %arg4: memref<8x1xf32, #tpu.memory_space<vmem>>, %arg5: memref<8x1xf32, #tpu.memory_space<vmem>>, %arg6: memref<8x1xf32, #tpu.memory_space<vmem>>, %arg7: memref<8x1xf32, #tpu.memory_space<vmem>>) attributes {dimension_semantics = [#tpu.dimension_semantics<parallel>, #tpu.dimension_semantics<arbitrary>], iteration_bounds = array<i64: 1, 1>, scalar_prefetch = 0 : i64, scratch_operands = 3 : i64, tpu.core_type = #tpu.core_type<tc>, window_params = [{transform_indices = @transform_0, window_bounds = array<i64: 8, 32>}, {transform_indices = @transform_1, window_bounds = array<i64: 8, 32>}, {transform_indices = @transform_2, window_bounds = array<i64: 8, 1>}]} {
    %c0_i32 = arith.constant 0 : i32
    %0 = arith.cmpi eq, %arg1, %c0_i32 : i32
    %1 = arith.extui %0 : i1 to i32
    %c0_i32_0 = arith.constant 0 : i32
    %2 = arith.cmpi ne, %1, %c0_i32_0 : i32
    scf.if %2 {
      %cst_21 = arith.constant 0xFF800000 : f32
      %36 = vector.broadcast %cst_21 : f32 to vector<8x1xf32>
      %c0_22 = arith.constant 0 : index
      %c0_23 = arith.constant 0 : index
      %37 = vector.load %arg5[%c0_22, %c0_23] : memref<8x1xf32, #tpu.memory_space<vmem>>, vector<8x1xf32>
      tpu.vector_store %arg5[%c0_22, %c0_23], %36 {strides = array<i32>} : memref<8x1xf32, #tpu.memory_space<vmem>>, vector<8x1xf32>,
      %cst_24 = arith.constant 0.000000e+00 : f32
      %38 = vector.broadcast %cst_24 : f32 to vector<8x1xf32>
      %c0_25 = arith.constant 0 : index
      %c0_26 = arith.constant 0 : index
      %39 = vector.load %arg6[%c0_25, %c0_26] : memref<8x1xf32, #tpu.memory_space<vmem>>, vector<8x1xf32>
      tpu.vector_store %arg6[%c0_25, %c0_26], %38 {strides = array<i32>} : memref<8x1xf32, #tpu.memory_space<vmem>>, vector<8x1xf32>,
      %cst_27 = arith.constant 0.000000e+00 : f32
      %40 = vector.broadcast %cst_27 : f32 to vector<8x1xf32>
      %c0_28 = arith.constant 0 : index
      %c0_29 = arith.constant 0 : index
      %41 = vector.load %arg7[%c0_28, %c0_29] : memref<8x1xf32, #tpu.memory_space<vmem>>, vector<8x1xf32>
      tpu.vector_store %arg7[%c0_28, %c0_29], %40 {strides = array<i32>} : memref<8x1xf32, #tpu.memory_space<vmem>>, vector<8x1xf32>,
    } else {
    }
    %c0 = arith.constant 0 : index
    %c0_1 = arith.constant 0 : index
    %3 = vector.load %arg2[%c0, %c0_1] : memref<8x32xf32, #tpu.memory_space<vmem>>, vector<8x32xf32>
    %c0_2 = arith.constant 0 : index
    %c0_3 = arith.constant 0 : index
    %4 = vector.load %arg3[%c0_2, %c0_3] : memref<8x32xf32, #tpu.memory_space<vmem>>, vector<8x32xf32>
    %cst = arith.constant dense<0.000000e+00> : vector<8x8xf32>
    %5 = tpu.matmul %3, %4, %cst {dimension_numbers = #tpu.dot_dimension_numbers<[1], [1], [0], [0], [0, 0, 1, 0], [], []>} : vector<8x32xf32>, vector<8x32xf32>, vector<8x8xf32> -> vector<8x8xf32>
    %cst_4 = arith.constant 14.2857141 : f32
    %6 = vector.broadcast %cst_4 : f32 to vector<8x8xf32>
    %7 = arith.mulf %5, %6 : vector<8x8xf32>
    %c8_i32 = arith.constant 8 : i32
    %8 = arith.muli %arg0, %c8_i32 : i32
    %c8_i32_5 = arith.constant 8 : i32
    %9 = arith.muli %arg1, %c8_i32_5 : i32
    %c8_i32_6 = arith.constant 8 : i32
    %10 = arith.addi %8, %c8_i32_6 : i32
    %11 = arith.cmpi slt, %9, %10 : i32
    %c8_i32_7 = arith.constant 8 : i32
    %12 = arith.addi %9, %c8_i32_7 : i32
    %13 = arith.cmpi sgt, %12, %8 : i32
    %14 = arith.andi %11, %13 : i1
    %15 = arith.extui %14 : i1 to i32
    %c0_i32_8 = arith.constant 0 : i32
    %16 = arith.cmpi ne, %15, %c0_i32_8 : i32
    scf.if %16 {
      %36 = tpu.iota {dimensions = array<i32: 0>} : vector<8x8xi32>
      %37 = vector.broadcast %8 : i32 to vector<8x8xi32>
      %38 = arith.addi %37, %36 : vector<8x8xi32>
      %39 = tpu.iota {dimensions = array<i32: 1>} : vector<8x8xi32>
      %40 = vector.broadcast %9 : i32 to vector<8x8xi32>
      %41 = arith.addi %40, %39 : vector<8x8xi32>
      %c0_21 = arith.constant 0 : index
      %c0_22 = arith.constant 0 : index
      %42 = vector.load %arg7[%c0_21, %c0_22] : memref<8x1xf32, #tpu.memory_space<vmem>>, vector<8x1xf32>
      %43 = arith.cmpi eq, %38, %41 : vector<8x8xi32>
      %cst_23 = arith.constant 0.000000e+00 : f32
      %44 = vector.broadcast %cst_23 : f32 to vector<8x8xf32>
      %45 = arith.select %43, %7, %44 : vector<8x8xi1>, vector<8x8xf32>
      %cst_24 = arith.constant dense<0.000000e+00> : vector<8xf32>
      %46 = vector.multi_reduction <add>, %45, %cst_24 [1] : vector<8x8xf32> to vector<8xf32>
      %47 = vector.shape_cast %46 : vector<8xf32> to vector<8x1xf32>
      %48 = arith.addf %42, %47 : vector<8x1xf32>
      %c0_25 = arith.constant 0 : index
      %c0_26 = arith.constant 0 : index
      %49 = vector.load %arg7[%c0_25, %c0_26] : memref<8x1xf32, #tpu.memory_space<vmem>>, vector<8x1xf32>
      tpu.vector_store %arg7[%c0_25, %c0_26], %48 {strides = array<i32>} : memref<8x1xf32, #tpu.memory_space<vmem>>, vector<8x1xf32>,
    } else {
    }
    %c0_9 = arith.constant 0 : index
    %c0_10 = arith.constant 0 : index
    %17 = vector.load %arg5[%c0_9, %c0_10] : memref<8x1xf32, #tpu.memory_space<vmem>>, vector<8x1xf32>
    %cst_11 = arith.constant dense<0xFF800000> : vector<8xf32>
    %18 = vector.multi_reduction <maximumf>, %7, %cst_11 [1] : vector<8x8xf32> to vector<8xf32>
    %19 = vector.shape_cast %18 : vector<8xf32> to vector<8x1xf32>
    %20 = arith.maximumf %17, %19 : vector<8x1xf32>
    %21 = arith.subf %17, %20 : vector<8x1xf32>
    %22 = math.exp %21 : vector<8x1xf32>
    %c0_12 = arith.constant 0 : index
    %c0_13 = arith.constant 0 : index
    %23 = vector.load %arg6[%c0_12, %c0_13] : memref<8x1xf32, #tpu.memory_space<vmem>>, vector<8x1xf32>
    %24 = arith.mulf %22, %23 : vector<8x1xf32>
    %25 = vector.broadcast %20 : vector<8x1xf32> to vector<8x8xf32>
    %26 = arith.subf %7, %25 : vector<8x8xf32>
    %27 = math.exp %26 : vector<8x8xf32>
    %cst_14 = arith.constant dense<0.000000e+00> : vector<8xf32>
    %28 = vector.multi_reduction <add>, %27, %cst_14 [1] : vector<8x8xf32> to vector<8xf32>
    %29 = vector.shape_cast %28 : vector<8xf32> to vector<8x1xf32>
    %30 = arith.addf %24, %29 : vector<8x1xf32>
    %c0_15 = arith.constant 0 : index
    %c0_16 = arith.constant 0 : index
    %31 = vector.load %arg6[%c0_15, %c0_16] : memref<8x1xf32, #tpu.memory_space<vmem>>, vector<8x1xf32>
    tpu.vector_store %arg6[%c0_15, %c0_16], %30 {strides = array<i32>} : memref<8x1xf32, #tpu.memory_space<vmem>>, vector<8x1xf32>,
    %c0_17 = arith.constant 0 : index
    %c0_18 = arith.constant 0 : index
    %32 = vector.load %arg5[%c0_17, %c0_18] : memref<8x1xf32, #tpu.memory_space<vmem>>, vector<8x1xf32>
    tpu.vector_store %arg5[%c0_17, %c0_18], %20 {strides = array<i32>} : memref<8x1xf32, #tpu.memory_space<vmem>>, vector<8x1xf32>,
    %c0_i32_19 = arith.constant 0 : i32
    %33 = arith.cmpi eq, %arg1, %c0_i32_19 : i32
    %34 = arith.extui %33 : i1 to i32
    %c0_i32_20 = arith.constant 0 : i32
    %35 = arith.cmpi ne, %34, %c0_i32_20 : i32
    scf.if %35 {
      %c0_21 = arith.constant 0 : index
      %c0_22 = arith.constant 0 : index
      %36 = vector.load %arg5[%c0_21, %c0_22] : memref<8x1xf32, #tpu.memory_space<vmem>>, vector<8x1xf32>
      %c0_23 = arith.constant 0 : index
      %c0_24 = arith.constant 0 : index
      %37 = vector.load %arg6[%c0_23, %c0_24] : memref<8x1xf32, #tpu.memory_space<vmem>>, vector<8x1xf32>
      %38 = math.log %37 : vector<8x1xf32>
      %39 = arith.addf %36, %38 : vector<8x1xf32>
      %c0_25 = arith.constant 0 : index
      %c0_26 = arith.constant 0 : index
      %40 = vector.load %arg7[%c0_25, %c0_26] : memref<8x1xf32, #tpu.memory_space<vmem>>, vector<8x1xf32>
      %41 = arith.subf %39, %40 : vector<8x1xf32>
      %c0_27 = arith.constant 0 : index
      %c0_28 = arith.constant 0 : index
      %42 = vector.load %arg4[%c0_27, %c0_28] : memref<8x1xf32, #tpu.memory_space<vmem>>, vector<8x1xf32>
      tpu.vector_store %arg4[%c0_27, %c0_28], %41 {strides = array<i32>} : memref<8x1xf32, #tpu.memory_space<vmem>>, vector<8x1xf32>,
    } else {
    }
    return
  }
  func.func @transform_0(%arg0: i32, %arg1: i32) -> (i32, i32) {
    %c0_i32 = arith.constant 0 : i32
    %c0_i32_0 = arith.constant 0 : i32
    return %arg0, %c0_i32 : i32, i32
  }
  func.func @transform_1(%arg0: i32, %arg1: i32) -> (i32, i32) {
    %c0_i32 = arith.constant 0 : i32
    %c0_i32_0 = arith.constant 0 : i32
    return %arg1, %c0_i32 : i32, i32
  }
  func.func @transform_2(%arg0: i32, %arg1: i32) -> (i32, i32) {
    %c0_i32 = arith.constant 0 : i32
    %c0_i32_0 = arith.constant 0 : i32
    return %arg0, %c0_i32 : i32, i32
  }
}

</mosaic_0001>

<llo_original>
// kernel: tpu_custom_call.1
$region0: #{tpu_custom_call.1}
  #allocation0 [shape = 'u32[]', space=smem, size = 0x4, offset = 0x4, fixed_abs, tag = 'smem constant byte address 0x4 - core index']
  #allocation1 [shape = 'u32[144,128]{1,0:T(1,128)}', space=vmem, size = 0x12000, scoped, tag = 'internal scratch']
  #allocation2 [shape = 'f32[8,1]{1,0:T(8,128)}', space=vmem, size = 0x1000, scoped, tag = 'scratch operand']
  #allocation3 [shape = 'f32[8,1]{1,0:T(8,128)}', space=vmem, size = 0x1000, scoped, tag = 'scratch operand']
  #allocation4 [shape = 'f32[8,1]{1,0:T(8,128)}', space=vmem, size = 0x1000, scoped, tag = 'scratch operand']
  %s0 = inlined_call_operand.hbm [shape: f32[8,32], index: 0, kind: input, shape index: {}]
  %s1 = inlined_call_operand.hbm [shape: f32[8,32], index: 1, kind: input, shape index: {}]
  %s2 = inlined_call_operand.vmem [shape: f32[8,1], index: 2, kind: output, shape index: {}]
  %s3 = sld [smem:[#allocation0]]
  $region38: #{tpu_custom_call.1} parent=0
    _
  %s5 = ssub.s32 1, %s3
  %s6 = scalar_select 0, %s5, %s3
  $region1: #{tpu_custom_call.1} parent=0
    #allocation5 [shape = 'u8[4096]{0}', space=vmem, size = 0x1000, scoped, tag = 'input window, operand 0, single buffered']
    #allocation6 [shape = 's32[1]{0}', space=sflag, size = 0x4, scoped, tag = 'scoped memory for tpu_custom_call.1']
    #allocation7 [shape = 'u8[4096]{0}', space=vmem, size = 0x1000, scoped, tag = 'input window, operand 1, single buffered']
    #allocation8 [shape = 's32[1]{0}', space=sflag, size = 0x4, scoped, tag = 'scoped memory for tpu_custom_call.1']
    %7 = vsyncpa [#allocation6], 0
    %8 = vsyncpa [#allocation8], 0
    // Predicated region
    $region2: #{tpu_custom_call.1} parent=1 // pred_check
      _
    $region3: #{tpu_custom_call.1} parent=1 // pred_check_branch
      %10 = sbr.rel (0) target = $region5
    $region4: #{tpu_custom_call.1} parent=1 // pred_region
      %s12 = ssub.s32 128, 128
      %13 = vsyncadd [#allocation6], %s12
      %s15 = sshll.u32 [#allocation5], 4
      %s16 = int_to_ptr.vmem [resolvable:$true] %s15
      %18 = dma.hbm_to_vmem [thread:$0]  %s0, 128, %s16, [#allocation6]
    $region5: #{tpu_custom_call.1} parent=1 // pred_fallthru
      _
    // Predicated region
    $region6: #{tpu_custom_call.1} parent=1 // pred_check
      _
    $region7: #{tpu_custom_call.1} parent=1 // pred_check_branch
      %20 = sbr.rel (0) target = $region9
    $region8: #{tpu_custom_call.1} parent=1 // pred_region
      %s22 = ssub.s32 128, 128
      %23 = vsyncadd [#allocation8], %s22
      %s25 = sshll.u32 [#allocation7], 4
      %s26 = int_to_ptr.vmem [resolvable:$true] %s25
      %28 = dma.hbm_to_vmem [thread:$0]  %s1, 128, %s26, [#allocation8]
    $region9: #{tpu_custom_call.1} parent=1 // pred_fallthru
      _
    // Predicated region
    $region10: #{tpu_custom_call.1} parent=1 // pred_check
      _
    $region11: #{tpu_custom_call.1} parent=1 // pred_check_branch
      %30 = sbr.rel (0) target = $region13
    $region12: #{tpu_custom_call.1} parent=1 // pred_region
      %31 = dma.done [#allocation6], 128
    $region13: #{tpu_custom_call.1} parent=1 // pred_fallthru
      _
    // Predicated region
    $region14: #{tpu_custom_call.1} parent=1 // pred_check
      _
    $region15: #{tpu_custom_call.1} parent=1 // pred_check_branch
      %33 = sbr.rel (0) target = $region17
    $region16: #{tpu_custom_call.1} parent=1 // pred_region
      %34 = dma.done [#allocation8], 128
    $region17: #{tpu_custom_call.1} parent=1 // pred_fallthru
      _
    %p35 = scmp.eq.s32.totalorder 0, 0
    // Predicated region
    $region18: #{tpu_custom_call.1} parent=1 // pred_check
      %p36 = pneg %p35
    $region19: #{tpu_custom_call.1} parent=1 // pred_check_branch
      %38 = sbr.rel (%p36) target = $region21
    $region20: #{tpu_custom_call.1} parent=1 // pred_region
      %vm39 = vcmask 7168
      %40 = vst.msk [vmem:[#allocation2] sm:$0xff] %vm39, -inf
      %41 = vst.msk [vmem:[#allocation3] sm:$0xff] %vm39, 0.0
      %42 = vst.msk [vmem:[#allocation4] sm:$0xff] %vm39, 0.0
    $region21: #{tpu_custom_call.1} parent=1 // pred_fallthru
      _
    %v43 = vld [vmem:[#allocation5] sm:$0xff]
    %v44 = vld [vmem:[#allocation7] sm:$0xff]
    %vm45 = vcmask 261120
    %v47 = vsel %vm45, %v43, 0
    %v50 = vsel %vm45, %v44, 0
    %52 = vmatprep.subr.mxu0 0.0
    %53 = vmatpush1.xpose.msra.mxu0 %v50
    %54 = vmatprep.subr.mxu0 0.0
    %55 = vmatpush1.xpose.msra.mxu0 0.0
    %56 = vmatprep.subr.mxu0 0.0
    %57 = vmatpush1.xpose.msra.mxu0 0.0
    %58 = vmatprep.subr.mxu0 0.0
    %59 = vmatpush1.xpose.msra.mxu0 0.0
    %60 = vmatprep.subr.mxu0 0.0
    %61 = vmatpush1.xpose.msra.mxu0 0.0
    %62 = vmatprep.subr.mxu0 0.0
    %63 = vmatpush1.xpose.msra.mxu0 0.0
    %64 = vmatprep.subr.mxu0 0.0
    %65 = vmatpush1.xpose.msra.mxu0 0.0
    %66 = vmatprep.subr.mxu0 0.0
    %67 = vmatpush1.xpose.msra.mxu0 0.0
    %68 = vmatprep.subr.mxu0 0.0
    %69 = vmatpush1.xpose.msra.mxu0 0.0
    %70 = vmatprep.subr.mxu0 0.0
    %71 = vmatpush1.xpose.msra.mxu0 0.0
    %72 = vmatprep.subr.mxu0 0.0
    %73 = vmatpush1.xpose.msra.mxu0 0.0
    %74 = vmatprep.subr.mxu0 0.0
    %75 = vmatpush1.xpose.msra.mxu0 0.0
    %76 = vmatprep.subr.mxu0 0.0
    %77 = vmatpush1.xpose.msra.mxu0 0.0
    %78 = vmatprep.subr.mxu0 0.0
    %79 = vmatpush1.xpose.msra.mxu0 0.0
    %80 = vmatprep.subr.mxu0 0.0
    %81 = vmatpush1.xpose.msra.mxu0 0.0
    %82 = vmatprep.subr.mxu0 0.0
    %83 = vmatpush1.xpose.msra.mxu0 0.0
    %84 = vmatprep.subr.mxu0 0.0
    %85 = vmatpush1.xpose.msra.mxu0 0.0
    %86 = vmatprep.subr.mxu0 0.0
    %87 = vmatpush1.xpose.msra.mxu0 0.0
    %88 = vmatprep.subr.mxu0 0.0
    %89 = vmatpush1.xpose.msra.mxu0 0.0
    %90 = vmatprep.subr.mxu0 0.0
    %91 = vmatpush1.xpose.msra.mxu0 0.0
    %92 = vmatprep.subr.mxu0 0.0
    %93 = vmatpush1.xpose.msra.mxu0 0.0
    %94 = vmatprep.subr.mxu0 0.0
    %95 = vmatpush1.xpose.msra.mxu0 0.0
    %96 = vmatprep.subr.mxu0 0.0
    %97 = vmatpush1.xpose.msra.mxu0 0.0
    %98 = vmatprep.subr.mxu0 0.0
    %99 = vmatpush1.xpose.msra.mxu0 0.0
    %100 = vmatprep.subr.mxu0 0.0
    %101 = vmatpush1.xpose.msra.mxu0 0.0
    %102 = vmatprep.subr.mxu0 0.0
    %103 = vmatpush1.xpose.msra.mxu0 0.0
    %104 = vmatprep.subr.mxu0 0.0
    %105 = vmatpush1.xpose.msra.mxu0 0.0
    %106 = vmatprep.subr.mxu0 0.0
    %107 = vmatpush1.xpose.msra.mxu0 0.0
    %108 = vmatprep.subr.mxu0 0.0
    %109 = vmatpush1.xpose.msra.mxu0 0.0
    %110 = vmatprep.subr.mxu0 0.0
    %111 = vmatpush1.xpose.msra.mxu0 0.0
    %112 = vmatprep.subr.mxu0 0.0
    %113 = vmatpush1.xpose.msra.mxu0 0.0
    %114 = vmatprep.subr.mxu0 0.0
    %115 = vmatpush1.xpose.msra.mxu0 0.0
    %116 = vmatprep.mubr.f32.mxu0 0.0
    %117 = vmatmul.mubr.f32.gmra.mrb[0].mxu0 %v47
    %v118 = vpop.f32.mrb[0].mxu0
    %v119 = vadd.f32 0.0, %v118
    %v120 = vpop.f32.mrb[0].mxu0
    %121 = vdwg.mxu0
    %v122 = vmul.f32 %v119, 14.285714
    %s123 = smul.u32 0, 8
    %s124 = smul.u32 0, 8
    %s125 = sadd.s32 %s123, 8
    %p126 = scmp.lt.s32.totalorder %s124, %s125
    %s127 = sadd.s32 %s124, 8
    %p128 = scmp.gt.s32.totalorder %s127, %s123
    %p129 = pnand %p126, %p128
    %p130 = pneg %p129
    // Predicated region
    $region22: #{tpu_custom_call.1} parent=1 // pred_check
      _
    $region23: #{tpu_custom_call.1} parent=1 // pred_check_branch
      %132 = sbr.rel (%p129) target = $region25
    $region24: #{tpu_custom_call.1} parent=1 // pred_region
      %v133 = vlaneseq
      %v134 = vshrl.u32 %v133, 7
      %v135 = vstv %s123
      %v136 = vadd.s32 %v135, %v134
      %v137 = vlaneseq
      %v138 = vand.u32 %v137, 127
      %v139 = vstv %s124
      %v140 = vadd.s32 %v139, %v138
      %v141 = vld [vmem:[#allocation4] sm:$0xff]
      %vm142 = vcmp.eq.s32.totalorder %v136, %v140
      %v143 = vsel %vm142, %v122, 0.0
      %vm144 = vcmask 64512
      %v145 = vsel %vm144, %v143, 0.0
      %146 = vadd.xlane.f32.xlu0 %v145
      %v147 = vpop.xlane.xlu0 %146
      %v148 = vadd.f32 %v141, %v147
      %vm149 = vcmask 7168
      %150 = vst.msk [vmem:[#allocation4] sm:$0xff] %vm149, %v148
    $region25: #{tpu_custom_call.1} parent=1 // pred_fallthru
      _
    %v151 = vld [vmem:[#allocation2] sm:$0xff]
    %vm152 = vcmask 64512
    %v153 = vsel %vm152, %v122, -inf
    %154 = vmax.xlane.f32.xlu0 %v153
    %v155 = vpop.xlane.xlu0 %154
    %v156 = vmax.f32 %v151, %v155
    %v157 = vsub.f32 %v151, %v156
    %v158 = vmul.f32 %v157, 1.442695
    %v159 = vpow.pop %v158
    %v160 = vld [vmem:[#allocation3] sm:$0xff]
    %v161 = vmul.f32 %v159, %v160
    %163 = vset.pattern.permute.xlu0 0
    %164 = vperm.xlu0 %163, %v156
    %v165 = vpop.permute.xlu0 %164
    %v167 = vsub.f32 %v122, %v165
    %v168 = vmul.f32 %v167, 1.442695
    %v169 = vpow.pop %v168
    %v170 = vsel %vm152, %v169, 0.0
    %171 = vadd.xlane.f32.xlu0 %v170
    %v172 = vpop.xlane.xlu0 %171
    %v173 = vadd.f32 %v161, %v172
    %vm174 = vcmask 7168
    %175 = vst.msk [vmem:[#allocation3] sm:$0xff] %vm174, %v173
    %176 = vst.msk [vmem:[#allocation2] sm:$0xff] %vm174, %v156
    // Predicated region
    $region26: #{tpu_custom_call.1} parent=1 // pred_check
      %p177 = pneg %p35
    $region27: #{tpu_custom_call.1} parent=1 // pred_check_branch
      %179 = sbr.rel (%p177) target = $region29
    $region28: #{tpu_custom_call.1} parent=1 // pred_region
      %v180 = vld [vmem:[#allocation2] sm:$0xff]
      %v181 = vld [vmem:[#allocation3] sm:$0xff]
      %v182 = vlog2.pop %v181
      %v183 = vmul.f32 %v182, 0.6931472
      %v184 = vadd.f32 %v180, %v183
      %v185 = vld [vmem:[#allocation4] sm:$0xff]
      %v186 = vsub.f32 %v184, %v185
      %187 = vst.msk [vmem:[%s2] sm:$0xff] %vm174, %v186
    $region29: #{tpu_custom_call.1} parent=1 // pred_fallthru
      _
    // Predicated region
    $region30: #{tpu_custom_call.1} parent=1 // pred_check
      _
    $region31: #{tpu_custom_call.1} parent=1 // pred_check_branch
      %189 = sbr.rel (0) target = $region33
    $region32: #{tpu_custom_call.1} parent=1 // pred_region
      _
    $region33: #{tpu_custom_call.1} parent=1 // pred_fallthru
      _
    // Predicated region
    $region34: #{tpu_custom_call.1} parent=1 // pred_check
      _
    $region35: #{tpu_custom_call.1} parent=1 // pred_check_branch
      %191 = sbr.rel (0) target = $region37
    $region36: #{tpu_custom_call.1} parent=1 // pred_region
      _
    $region37: #{tpu_custom_call.1} parent=1 // pred_fallthru
      _
    %192 = vsyncpa [#allocation6], 1
    %193 = vsyncpa [#allocation8], 1

</llo_original>
